<compile_context>
chip_gen: v5e
topology: v5e:2x2
jax: 0.10.0
libtpu: 0.0.40
codegen_flags: <defaults>
</compile_context>

<pallas_src>
import jax
import jax.numpy as jnp
from jax import lax
from jax.experimental import pallas as pl
from jax.experimental.pallas import tpu as pltpu

# Keep the pure-JAX reference matmuls in real f32 so the tolerance check is
# meaningful (kernel matmuls already request f32 accumulation on the MXU).
jax.config.update("jax_default_matmul_precision", "float32")

VOCAB = 50         # nn.Embedding(50, d_model // 4)
VOCAB_PAD = 128    # lane-dense padded vocab (zero rows contribute nothing)


# --------------------------------------------------------------------------- #
# Kernel
# --------------------------------------------------------------------------- #
def _plan_encoder_kernel(nt_ref, scal_ref, embf_ref, wsf_ref, bf_ref, o_ref):
    bt, n_nodes = nt_ref.shape
    vocab_pad = embf_ref.shape[0]

    nt = nt_ref[...]                                                # (bt, N) int32
    vocab_ids = lax.broadcasted_iota(jnp.int32, (1, vocab_pad), 1)  # (1, 128)

    # Histogram of node-type ids: int32 one-hot accumulation (pure VPU,
    # lane-dense 128-wide), single convert to f32 after the loop.
    counts = jnp.zeros((bt, vocab_pad), jnp.int32)
    for n in range(n_nodes):                                        # static, small
        counts = counts + (nt[:, n:n + 1] == vocab_ids).astype(jnp.int32)
    counts_f = counts.astype(jnp.float32)                           # (bt, 128)

    # mean(Embedding(ids)) folded through the fusion Linear:
    #   counts_f @ ((1/N) * emb_table @ Wf[:d4])  -> (bt, d)
    # scalar projections folded through the fusion Linear:
    #   [cost, rows, sel] @ w_scal_fused          -> (bt, d)
    out = (jnp.dot(counts_f, embf_ref[...], preferred_element_type=jnp.float32)
           + jnp.dot(scal_ref[...], wsf_ref[...],
                     preferred_element_type=jnp.float32)
           + bf_ref[...])
    o_ref[...] = out.astype(o_ref.dtype)


# --------------------------------------------------------------------------- #
# Wrapper
# --------------------------------------------------------------------------- #
def _round_up(x, m):
    return ((x + m - 1) // m) * m


def plan_encoder_forward(params, plan_features, *, batch_tile=512):
    node_types = plan_features["node_types"].astype(jnp.int32)      # (B, N)
    costs = plan_features["costs"]
    rows = plan_features["rows"]
    sels = plan_features["selectivities"]
    if costs.ndim == 1:
        costs = costs[:, None]
    if rows.ndim == 1:
        rows = rows[:, None]
    if sels.ndim == 1:
        sels = sels[:, None]

    B, N = node_types.shape
    emb = params["emb_table"]
    vocab, d4 = emb.shape
    d_model = 4 * d4
    dtype = params["w_fusion"].dtype
    f32 = jnp.float32

    # ---- one-time parameter glue: compose the linears offline (exact) ------
    wf_t = params["w_fusion"].T.astype(f32)                         # (in=d, out=d)

    emb_pad = jnp.zeros((VOCAB_PAD, d4), f32).at[:vocab].set(emb.astype(f32))
    # Embedding path folded through fusion; 1/N mean-scale folded in too.
    emb_fused = (emb_pad @ wf_t[0:d4, :]) * (1.0 / N)               # (128, d)

    # Scalar projections folded through fusion (each 1->d/4 weight hits its
    # own d/4-row slab of the fusion weight).
    w_scal_fused = jnp.stack([
        params["w_cost"].astype(f32) @ wf_t[d4:2 * d4, :],
        params["w_rows"].astype(f32) @ wf_t[2 * d4:3 * d4, :],
        params["w_sel"].astype(f32) @ wf_t[3 * d4:4 * d4, :],
    ], axis=0)                                                      # (3, d)

    b_fused = (params["b_cost"].astype(f32) @ wf_t[d4:2 * d4, :]
               + params["b_rows"].astype(f32) @ wf_t[2 * d4:3 * d4, :]
               + params["b_sel"].astype(f32) @ wf_t[3 * d4:4 * d4, :]
               + params["b_fusion"].astype(f32))[None, :]           # (1, d)

    scalars = jnp.concatenate([costs, rows, sels], axis=-1).astype(f32)  # (B, 3)

    # ---- tiling -------------------------------------------------------------
    # bt == B (full dim) for small batches; multiple-of-8 tile otherwise.
    # For B >= 512 guarantee >= 2 grid steps so both v7x TensorCores get work
    # under dimension_semantics=("parallel",).
    if B <= batch_tile:
        bt = B
        if B >= 512:
            bt = _round_up(-(-B // 2), 8)      # ceil(B/2) rounded up to 8
    else:
        bt = batch_tile
    grid = (pl.cdiv(B, bt),)

    return pl.pallas_call(
        _plan_encoder_kernel,
        out_shape=jax.ShapeDtypeStruct((B, d_model), dtype),
        grid_spec=pl.GridSpec(
            grid=grid,
            in_specs=[
                pl.BlockSpec((bt, N), lambda i: (i, 0)),              # node_types
                pl.BlockSpec((bt, 3), lambda i: (i, 0)),              # scalars
                pl.BlockSpec((VOCAB_PAD, d_model), lambda i: (0, 0)),  # emb_fused
                pl.BlockSpec((3, d_model), lambda i: (0, 0)),         # w_scal_fused
                pl.BlockSpec((1, d_model), lambda i: (0, 0)),         # b_fused
            ],
            out_specs=pl.BlockSpec((bt, d_model), lambda i: (i, 0)),
        ),
        compiler_params=pltpu.CompilerParams(
            dimension_semantics=("parallel",),
            # Per-step footprint: 2x(in+out) blocks + ~0.3 MiB of weights;
            # < 3 MiB even at bt=1024 — well within every generation's scoped
            # budget (incl. v7x's 64 MiB physical / 32 MiB default).
            vmem_limit_bytes=32 * 1024 * 1024,
        ),
    )(node_types, scalars, emb_fused, w_scal_fused, b_fused)


# --------------------------------------------------------------------------- #
# Params + pure-JAX reference (mirrors the PyTorch forward literally)
# --------------------------------------------------------------------------- #
def init_plan_encoder_params(key, d_model=256, vocab=VOCAB, scale=0.1,
                             dtype=jnp.float32):
    d4 = d_model // 4
    ks = jax.random.split(key, 9)

    def rnd(k, shape):
        return (scale * jax.random.normal(k, shape)).astype(dtype)

    return {
        "emb_table": rnd(ks[0], (vocab, d4)),
        "w_cost": rnd(ks[1], (d4,)), "b_cost": rnd(ks[2], (d4,)),
        "w_rows": rnd(ks[3], (d4,)), "b_rows": rnd(ks[4], (d4,)),
        "w_sel":  rnd(ks[5], (d4,)), "b_sel":  rnd(ks[6], (d4,)),
        "w_fusion": rnd(ks[7], (d_model, d_model)),   # (out, in) like torch
        "b_fusion": rnd(ks[8], (d_model,)),
    }


def plan_encoder_reference(params, plan_features):
    node_types = plan_features["node_types"]
    costs = plan_features["costs"]
    rows = plan_features["rows"]
    sels = plan_features["selectivities"]
    if costs.ndim == 1:
        costs = costs[:, None]
    if rows.ndim == 1:
        rows = rows[:, None]
    if sels.ndim == 1:
        sels = sels[:, None]

    node_emb = jnp.take(params["emb_table"], node_types, axis=0).mean(axis=1)
    cost_emb = costs * params["w_cost"][None, :] + params["b_cost"][None, :]
    rows_emb = rows * params["w_rows"][None, :] + params["b_rows"][None, :]
    sel_emb = sels * params["w_sel"][None, :] + params["b_sel"][None, :]
    combined = jnp.concatenate([node_emb, cost_emb, rows_emb, sel_emb], axis=-1)
    return combined @ params["w_fusion"].T + params["b_fusion"][None, :]


# --------------------------------------------------------------------------- #
if __name__ == "__main__":
    d_model = 256          # module default; d/4 = 64
    batch = 2
    num_nodes = 8          # plan nodes per query

    key = jax.random.PRNGKey(0)
    kp, k1, k2, k3, k4 = jax.random.split(key, 5)
    params = init_plan_encoder_params(kp, d_model)

    plan_features = {
        "node_types": jax.random.randint(k1, (batch, num_nodes), 0, VOCAB,
                                         dtype=jnp.int32),
        # 1-D on purpose: exercises the unsqueeze(-1) path of the torch module.
        "costs": jax.random.normal(k2, (batch,), dtype=jnp.float32),
        "rows": jax.random.normal(k3, (batch,), dtype=jnp.float32),
        "selectivities": jax.random.uniform(k4, (batch,), dtype=jnp.float32),
    }

    out = plan_encoder_forward(params, plan_features)
    out = jax.block_until_ready(out)

    ref = plan_encoder_reference(params, plan_features)
    assert out.shape == (batch, d_model)
    max_diff = float(jnp.max(jnp.abs(out - ref)))
    assert jnp.allclose(out, ref, atol=5e-3, rtol=5e-3), \
        f"mismatch vs reference, max abs diff {max_diff}"

    print("KERNEL_OK")
</pallas_src>

<mosaic_0001>
module attributes {stable_mosaic.version = 11 : i64} {
  func.func @_plan_encoder_kernel(%arg0: i32, %arg1: memref<2x8xi32, #tpu.memory_space<vmem>>, %arg2: memref<2x3xf32, #tpu.memory_space<vmem>>, %arg3: memref<128x256xf32, #tpu.memory_space<vmem>>, %arg4: memref<3x256xf32, #tpu.memory_space<vmem>>, %arg5: memref<1x256xf32, #tpu.memory_space<vmem>>, %arg6: memref<2x256xf32, #tpu.memory_space<vmem>>) attributes {dimension_semantics = [#tpu.dimension_semantics<parallel>], iteration_bounds = array<i64: 1>, scalar_prefetch = 0 : i64, scratch_operands = 0 : i64, tpu.core_type = #tpu.core_type<tc>, window_params = [{transform_indices = @transform_0, window_bounds = array<i64: 2, 8>}, {transform_indices = @transform_1, window_bounds = array<i64: 2, 3>}, {pipeline_mode = #tpu.pipeline_mode<synchronous>, transform_indices = @transform_2, window_bounds = array<i64: 128, 256>}, {pipeline_mode = #tpu.pipeline_mode<synchronous>, transform_indices = @transform_3, window_bounds = array<i64: 3, 256>}, {pipeline_mode = #tpu.pipeline_mode<synchronous>, transform_indices = @transform_4, window_bounds = array<i64: 1, 256>}, {transform_indices = @transform_5, window_bounds = array<i64: 2, 256>}]} {
    %c0 = arith.constant 0 : index
    %c0_0 = arith.constant 0 : index
    %0 = vector.load %arg1[%c0, %c0_0] : memref<2x8xi32, #tpu.memory_space<vmem>>, vector<2x8xi32>
    %1 = tpu.iota {dimensions = array<i32: 1>} : vector<1x128xi32>
    %c0_i32 = arith.constant 0 : i32
    %2 = vector.broadcast %c0_i32 : i32 to vector<2x128xi32>
    %3 = vector.extract_strided_slice %0 {offsets = [0, 0], sizes = [2, 1], strides = [1, 1]} : vector<2x8xi32> to vector<2x1xi32>
    %4 = vector.broadcast %3 : vector<2x1xi32> to vector<2x128xi32>
    %5 = vector.broadcast %1 : vector<1x128xi32> to vector<2x128xi32>
    %6 = arith.cmpi eq, %4, %5 : vector<2x128xi32>
    %7 = arith.extui %6 : vector<2x128xi1> to vector<2x128xi32>
    %8 = arith.addi %2, %7 : vector<2x128xi32>
    %9 = vector.extract_strided_slice %0 {offsets = [0, 1], sizes = [2, 1], strides = [1, 1]} : vector<2x8xi32> to vector<2x1xi32>
    %10 = vector.broadcast %9 : vector<2x1xi32> to vector<2x128xi32>
    %11 = vector.broadcast %1 : vector<1x128xi32> to vector<2x128xi32>
    %12 = arith.cmpi eq, %10, %11 : vector<2x128xi32>
    %13 = arith.extui %12 : vector<2x128xi1> to vector<2x128xi32>
    %14 = arith.addi %8, %13 : vector<2x128xi32>
    %15 = vector.extract_strided_slice %0 {offsets = [0, 2], sizes = [2, 1], strides = [1, 1]} : vector<2x8xi32> to vector<2x1xi32>
    %16 = vector.broadcast %15 : vector<2x1xi32> to vector<2x128xi32>
    %17 = vector.broadcast %1 : vector<1x128xi32> to vector<2x128xi32>
    %18 = arith.cmpi eq, %16, %17 : vector<2x128xi32>
    %19 = arith.extui %18 : vector<2x128xi1> to vector<2x128xi32>
    %20 = arith.addi %14, %19 : vector<2x128xi32>
    %21 = vector.extract_strided_slice %0 {offsets = [0, 3], sizes = [2, 1], strides = [1, 1]} : vector<2x8xi32> to vector<2x1xi32>
    %22 = vector.broadcast %21 : vector<2x1xi32> to vector<2x128xi32>
    %23 = vector.broadcast %1 : vector<1x128xi32> to vector<2x128xi32>
    %24 = arith.cmpi eq, %22, %23 : vector<2x128xi32>
    %25 = arith.extui %24 : vector<2x128xi1> to vector<2x128xi32>
    %26 = arith.addi %20, %25 : vector<2x128xi32>
    %27 = vector.extract_strided_slice %0 {offsets = [0, 4], sizes = [2, 1], strides = [1, 1]} : vector<2x8xi32> to vector<2x1xi32>
    %28 = vector.broadcast %27 : vector<2x1xi32> to vector<2x128xi32>
    %29 = vector.broadcast %1 : vector<1x128xi32> to vector<2x128xi32>
    %30 = arith.cmpi eq, %28, %29 : vector<2x128xi32>
    %31 = arith.extui %30 : vector<2x128xi1> to vector<2x128xi32>
    %32 = arith.addi %26, %31 : vector<2x128xi32>
    %33 = vector.extract_strided_slice %0 {offsets = [0, 5], sizes = [2, 1], strides = [1, 1]} : vector<2x8xi32> to vector<2x1xi32>
    %34 = vector.broadcast %33 : vector<2x1xi32> to vector<2x128xi32>
    %35 = vector.broadcast %1 : vector<1x128xi32> to vector<2x128xi32>
    %36 = arith.cmpi eq, %34, %35 : vector<2x128xi32>
    %37 = arith.extui %36 : vector<2x128xi1> to vector<2x128xi32>
    %38 = arith.addi %32, %37 : vector<2x128xi32>
    %39 = vector.extract_strided_slice %0 {offsets = [0, 6], sizes = [2, 1], strides = [1, 1]} : vector<2x8xi32> to vector<2x1xi32>
    %40 = vector.broadcast %39 : vector<2x1xi32> to vector<2x128xi32>
    %41 = vector.broadcast %1 : vector<1x128xi32> to vector<2x128xi32>
    %42 = arith.cmpi eq, %40, %41 : vector<2x128xi32>
    %43 = arith.extui %42 : vector<2x128xi1> to vector<2x128xi32>
    %44 = arith.addi %38, %43 : vector<2x128xi32>
    %45 = vector.extract_strided_slice %0 {offsets = [0, 7], sizes = [2, 1], strides = [1, 1]} : vector<2x8xi32> to vector<2x1xi32>
    %46 = vector.broadcast %45 : vector<2x1xi32> to vector<2x128xi32>
    %47 = vector.broadcast %1 : vector<1x128xi32> to vector<2x128xi32>
    %48 = arith.cmpi eq, %46, %47 : vector<2x128xi32>
    %49 = arith.extui %48 : vector<2x128xi1> to vector<2x128xi32>
    %50 = arith.addi %44, %49 : vector<2x128xi32>
    %51 = arith.sitofp %50 : vector<2x128xi32> to vector<2x128xf32>
    %c0_1 = arith.constant 0 : index
    %c0_2 = arith.constant 0 : index
    %52 = vector.load %arg3[%c0_1, %c0_2] : memref<128x256xf32, #tpu.memory_space<vmem>>, vector<128x256xf32>
    %cst = arith.constant dense<0.000000e+00> : vector<2x256xf32>
    %53 = tpu.matmul %51, %52, %cst {dimension_numbers = #tpu.dot_dimension_numbers<[1], [0], [0], [1], [0, 0, 1, 1], [], []>, precision = #tpu.contract_precision<fp32>} : vector<2x128xf32>, vector<128x256xf32>, vector<2x256xf32> -> vector<2x256xf32>
    %c0_3 = arith.constant 0 : index
    %c0_4 = arith.constant 0 : index
    %54 = vector.load %arg2[%c0_3, %c0_4] : memref<2x3xf32, #tpu.memory_space<vmem>>, vector<2x3xf32>
    %c0_5 = arith.constant 0 : index
    %c0_6 = arith.constant 0 : index
    %55 = vector.load %arg4[%c0_5, %c0_6] : memref<3x256xf32, #tpu.memory_space<vmem>>, vector<3x256xf32>
    %cst_7 = arith.constant dense<0.000000e+00> : vector<2x256xf32>
    %56 = tpu.matmul %54, %55, %cst_7 {dimension_numbers = #tpu.dot_dimension_numbers<[1], [0], [0], [1], [0, 0, 1, 1], [], []>, precision = #tpu.contract_precision<fp32>} : vector<2x3xf32>, vector<3x256xf32>, vector<2x256xf32> -> vector<2x256xf32>
    %57 = arith.addf %53, %56 : vector<2x256xf32>
    %c0_8 = arith.constant 0 : index
    %c0_9 = arith.constant 0 : index
    %58 = vector.load %arg5[%c0_8, %c0_9] : memref<1x256xf32, #tpu.memory_space<vmem>>, vector<1x256xf32>
    %59 = vector.broadcast %58 : vector<1x256xf32> to vector<2x256xf32>
    %60 = arith.addf %57, %59 : vector<2x256xf32>
    %c0_10 = arith.constant 0 : index
    %c0_11 = arith.constant 0 : index
    %61 = vector.load %arg6[%c0_10, %c0_11] : memref<2x256xf32, #tpu.memory_space<vmem>>, vector<2x256xf32>
    tpu.vector_store %arg6[%c0_10, %c0_11], %60 {strides = array<i32>} : memref<2x256xf32, #tpu.memory_space<vmem>>, vector<2x256xf32>,
    return
  }
  func.func @transform_0(%arg0: i32) -> (i32, i32) {
    %c0_i32 = arith.constant 0 : i32
    %c0_i32_0 = arith.constant 0 : i32
    return %arg0, %c0_i32 : i32, i32
  }
  func.func @transform_1(%arg0: i32) -> (i32, i32) {
    %c0_i32 = arith.constant 0 : i32
    %c0_i32_0 = arith.constant 0 : i32
    return %arg0, %c0_i32 : i32, i32
  }
  func.func @transform_2(%arg0: i32) -> (i32, i32) {
    %c0_i32 = arith.constant 0 : i32
    %c0_i32_0 = arith.constant 0 : i32
    %c0_i32_1 = arith.constant 0 : i32
    return %c0_i32, %c0_i32_0 : i32, i32
  }
  func.func @transform_3(%arg0: i32) -> (i32, i32) {
    %c0_i32 = arith.constant 0 : i32
    %c0_i32_0 = arith.constant 0 : i32
    %c0_i32_1 = arith.constant 0 : i32
    return %c0_i32, %c0_i32_0 : i32, i32
  }
  func.func @transform_4(%arg0: i32) -> (i32, i32) {
    %c0_i32 = arith.constant 0 : i32
    %c0_i32_0 = arith.constant 0 : i32
    %c0_i32_1 = arith.constant 0 : i32
    return %c0_i32, %c0_i32_0 : i32, i32
  }
  func.func @transform_5(%arg0: i32) -> (i32, i32) {
    %c0_i32 = arith.constant 0 : i32
    %c0_i32_0 = arith.constant 0 : i32
    return %arg0, %c0_i32 : i32, i32
  }
}

</mosaic_0001>

<llo_original>
// kernel: tpu_custom_call.1
$region0: #{tpu_custom_call.1}
  #allocation0 [shape = 'u32[]', space=smem, size = 0x4, offset = 0x4, fixed_abs, tag = 'smem constant byte address 0x4 - core index']
  #allocation1 [shape = 'u32[72,128]{1,0:T(1,128)}', space=vmem, size = 0x9000, scoped, tag = 'internal scratch']
  %s0 = inlined_call_operand.hbm [shape: s32[2,8], index: 0, kind: input, shape index: {}]
  %s1 = inlined_call_operand.hbm [shape: f32[2,3], index: 1, kind: input, shape index: {}]
  %s2 = inlined_call_operand.hbm [shape: f32[128,256], index: 2, kind: input, shape index: {}]
  %s3 = inlined_call_operand.hbm [shape: f32[3,256], index: 3, kind: input, shape index: {}]
  %s4 = inlined_call_operand.vmem [shape: f32[1,256], index: 4, kind: input, shape index: {}]
  %s5 = inlined_call_operand.hbm [shape: f32[2,256], index: 5, kind: output, shape index: {}]
  %s6 = sld [smem:[#allocation0]]
  $region46: #{tpu_custom_call.1} parent=0
    _
  %s8 = ssub.s32 1, %s6
  %s9 = scalar_select 0, %s8, %s6
  $region1: #{tpu_custom_call.1} parent=0
    #allocation2 [shape = 'u8[1024]{0}', space=vmem, size = 0x400, scoped, tag = 'input window, operand 0, single buffered']
    #allocation3 [shape = 's32[1]{0}', space=sflag, size = 0x4, scoped, tag = 'scoped memory for tpu_custom_call.1']
    #allocation4 [shape = 's32[1]{0}', space=sflag, size = 0x4, scoped, tag = 'scoped memory for tpu_custom_call.1']
    #allocation5 [shape = 'u8[1024]{0}', space=vmem, size = 0x400, scoped, tag = 'input window, operand 1, single buffered']
    #allocation6 [shape = 's32[1]{0}', space=sflag, size = 0x4, scoped, tag = 'scoped memory for tpu_custom_call.1']
    #allocation7 [shape = 'u8[131072]{0}', space=vmem, size = 0x20000, scoped, tag = 'input window, operand 2, single buffered']
    #allocation8 [shape = 'u8[4096]{0}', space=vmem, size = 0x1000, scoped, tag = 'input window, operand 3, single buffered']
    #allocation9 [shape = 's32[1]{0}', space=sflag, size = 0x4, scoped, tag = 'scoped memory for tpu_custom_call.1']
    #allocation10 [shape = 'u8[2048]{0}', space=vmem, size = 0x800, scoped, tag = 'output window, operand 0, single buffered']
    %10 = vsyncpa [#allocation3], 0
    %11 = vsyncpa [#allocation6], 0
    %12 = vsyncpa [#allocation9], 0
    %13 = vsyncpa [#allocation4], 0
    // Predicated region
    $region2: #{tpu_custom_call.1} parent=1 // pred_check
      _
    $region3: #{tpu_custom_call.1} parent=1 // pred_check_branch
      %15 = sbr.rel (0) target = $region5
    $region4: #{tpu_custom_call.1} parent=1 // pred_region
      %17 = vsyncadd [#allocation3], 0
      %s19 = sshll.u32 %s0, 4
      %s20 = int_to_ptr.hbm [resolvable:$true] %s19
      %s21 = sshll.u32 [#allocation2], 4
      %s22 = int_to_ptr.vmem [resolvable:$true] %s21
      %24 = dma.hbm_to_vmem [thread:$0]  %s20, 32, %s22, [#allocation3]
    $region5: #{tpu_custom_call.1} parent=1 // pred_fallthru
      _
    // Predicated region
    $region6: #{tpu_custom_call.1} parent=1 // pred_check
      _
    $region7: #{tpu_custom_call.1} parent=1 // pred_check_branch
      %26 = sbr.rel (0) target = $region9
    $region8: #{tpu_custom_call.1} parent=1 // pred_region
      %28 = vsyncadd [#allocation6], 0
      %s30 = sshll.u32 %s1, 4
      %s31 = int_to_ptr.hbm [resolvable:$true] %s30
      %s32 = sshll.u32 [#allocation5], 4
      %s33 = int_to_ptr.vmem [resolvable:$true] %s32
      %35 = dma.hbm_to_vmem [thread:$0]  %s31, 32, %s33, [#allocation6]
    $region9: #{tpu_custom_call.1} parent=1 // pred_fallthru
      _
    // Predicated region
    $region10: #{tpu_custom_call.1} parent=1 // pred_check
      _
    $region11: #{tpu_custom_call.1} parent=1 // pred_check_branch
      %37 = sbr.rel (0) target = $region13
    $region12: #{tpu_custom_call.1} parent=1 // pred_region
      %39 = vsyncadd [#allocation6], 0
      %s40 = sshll.u32 %s2, 4
      %s41 = int_to_ptr.hbm [resolvable:$true] %s40
      %s42 = sshll.u32 [#allocation7], 4
      %s43 = int_to_ptr.vmem [resolvable:$true] %s42
      %48 = dma.hbm_to_vmem [thread:$0]  %s41, 4096, %s43, [#allocation6], 256, 256, 16
    $region13: #{tpu_custom_call.1} parent=1 // pred_fallthru
      _
    // Predicated region
    $region14: #{tpu_custom_call.1} parent=1 // pred_check
      _
    $region15: #{tpu_custom_call.1} parent=1 // pred_check_branch
      %50 = sbr.rel (0) target = $region17
    $region16: #{tpu_custom_call.1} parent=1 // pred_region
      %52 = vsyncadd [#allocation9], 0
      %s54 = sshll.u32 %s3, 4
      %s55 = int_to_ptr.hbm [resolvable:$true] %s54
      %s56 = sshll.u32 [#allocation8], 4
      %s57 = int_to_ptr.vmem [resolvable:$true] %s56
      %59 = dma.hbm_to_vmem [thread:$0]  %s55, 128, %s57, [#allocation9]
    $region17: #{tpu_custom_call.1} parent=1 // pred_fallthru
      _
    // Predicated region
    $region18: #{tpu_custom_call.1} parent=1 // pred_check
      _
    $region19: #{tpu_custom_call.1} parent=1 // pred_check_branch
      %61 = sbr.rel (0) target = $region21
    $region20: #{tpu_custom_call.1} parent=1 // pred_region
      _
    $region21: #{tpu_custom_call.1} parent=1 // pred_fallthru
      _
    // Predicated region
    $region22: #{tpu_custom_call.1} parent=1 // pred_check
      _
    $region23: #{tpu_custom_call.1} parent=1 // pred_check_branch
      %63 = sbr.rel (0) target = $region25
    $region24: #{tpu_custom_call.1} parent=1 // pred_region
      %65 = dma.done [#allocation3], 32
    $region25: #{tpu_custom_call.1} parent=1 // pred_fallthru
      _
    // Predicated region
    $region26: #{tpu_custom_call.1} parent=1 // pred_check
      _
    $region27: #{tpu_custom_call.1} parent=1 // pred_check_branch
      %67 = sbr.rel (0) target = $region29
    $region28: #{tpu_custom_call.1} parent=1 // pred_region
      %69 = dma.done [#allocation6], 32
    $region29: #{tpu_custom_call.1} parent=1 // pred_fallthru
      _
    // Predicated region
    $region30: #{tpu_custom_call.1} parent=1 // pred_check
      _
    $region31: #{tpu_custom_call.1} parent=1 // pred_check_branch
      %71 = sbr.rel (0) target = $region33
    $region32: #{tpu_custom_call.1} parent=1 // pred_region
      %73 = dma.done [#allocation6], 4096
    $region33: #{tpu_custom_call.1} parent=1 // pred_fallthru
      _
    // Predicated region
    $region34: #{tpu_custom_call.1} parent=1 // pred_check
      _
    $region35: #{tpu_custom_call.1} parent=1 // pred_check_branch
      %75 = sbr.rel (0) target = $region37
    $region36: #{tpu_custom_call.1} parent=1 // pred_region
      %77 = dma.done [#allocation9], 128
    $region37: #{tpu_custom_call.1} parent=1 // pred_fallthru
      _
    %v78 = vld [vmem:[#allocation2] sm:$0x3]
    %v79 = vlaneseq
    %v80 = vand.u32 %v79, 127
    %81 = vset.pattern.permute.xlu0 0
    %82 = vperm.xlu0 %81, %v78
    %v83 = vpop.permute.xlu0 %82
    %vm84 = vcmp.eq.s32.totalorder %v83, %v80
    %v85 = vsel %vm84, 1, 0
    %86 = vset.pattern.permute.xlu0 1
    %87 = vperm.xlu0 %86, %v78
    %v88 = vpop.permute.xlu0 %87
    %vm89 = vcmp.eq.s32.totalorder %v88, %v80
    %v90 = vsel %vm89, 1, 0
    %v91 = vadd.s32 %v85, %v90
    %92 = vset.pattern.permute.xlu0 2
    %93 = vperm.xlu0 %92, %v78
    %v94 = vpop.permute.xlu0 %93
    %vm95 = vcmp.eq.s32.totalorder %v94, %v80
    %v96 = vsel %vm95, 1, 0
    %v97 = vadd.s32 %v91, %v96
    %98 = vset.pattern.permute.xlu0 3
    %99 = vperm.xlu0 %98, %v78
    %v100 = vpop.permute.xlu0 %99
    %vm101 = vcmp.eq.s32.totalorder %v100, %v80
    %v102 = vsel %vm101, 1, 0
    %v103 = vadd.s32 %v97, %v102
    %104 = vset.pattern.permute.xlu0 4
    %105 = vperm.xlu0 %104, %v78
    %v106 = vpop.permute.xlu0 %105
    %vm107 = vcmp.eq.s32.totalorder %v106, %v80
    %v108 = vsel %vm107, 1, 0
    %v109 = vadd.s32 %v103, %v108
    %110 = vset.pattern.permute.xlu0 5
    %111 = vperm.xlu0 %110, %v78
    %v112 = vpop.permute.xlu0 %111
    %vm113 = vcmp.eq.s32.totalorder %v112, %v80
    %v114 = vsel %vm113, 1, 0
    %v115 = vadd.s32 %v109, %v114
    %116 = vset.pattern.permute.xlu0 6
    %117 = vperm.xlu0 %116, %v78
    %v118 = vpop.permute.xlu0 %117
    %vm119 = vcmp.eq.s32.totalorder %v118, %v80
    %v120 = vsel %vm119, 1, 0
    %v121 = vadd.s32 %v115, %v120
    %122 = vset.pattern.permute.xlu0 7
    %123 = vperm.xlu0 %122, %v78
    %v124 = vpop.permute.xlu0 %123
    %vm125 = vcmp.eq.s32.totalorder %v124, %v80
    %v126 = vsel %vm125, 1, 0
    %v127 = vadd.s32 %v121, %v126
    %v128 = vcvt.s32.f32 %v127
    %v129 = vld [vmem:[#allocation7] sm:$0xff]
    %v130 = vld [vmem:[#allocation7 + $0x8] sm:$0xff]
    %v131 = vld [vmem:[#allocation7 + $0x10] sm:$0xff]
    %v132 = vld [vmem:[#allocation7 + $0x18] sm:$0xff]
    %v133 = vld [vmem:[#allocation7 + $0x20] sm:$0xff]
    %v134 = vld [vmem:[#allocation7 + $0x28] sm:$0xff]
    %v135 = vld [vmem:[#allocation7 + $0x30] sm:$0xff]
    %v136 = vld [vmem:[#allocation7 + $0x38] sm:$0xff]
    %v137 = vld [vmem:[#allocation7 + $0x40] sm:$0xff]
    %v138 = vld [vmem:[#allocation7 + $0x48] sm:$0xff]
    %v139 = vld [vmem:[#allocation7 + $0x50] sm:$0xff]
    %v140 = vld [vmem:[#allocation7 + $0x58] sm:$0xff]
    %v141 = vld [vmem:[#allocation7 + $0x60] sm:$0xff]
    %v142 = vld [vmem:[#allocation7 + $0x68] sm:$0xff]
    %v143 = vld [vmem:[#allocation7 + $0x70] sm:$0xff]
    %v144 = vld [vmem:[#allocation7 + $0x78] sm:$0xff]
    %v145 = vld [vmem:[#allocation7 + $0x80] sm:$0xff]
    %v146 = vld [vmem:[#allocation7 + $0x88] sm:$0xff]
    %v147 = vld [vmem:[#allocation7 + $0x90] sm:$0xff]
    %v148 = vld [vmem:[#allocation7 + $0x98] sm:$0xff]
    %v149 = vld [vmem:[#allocation7 + $0xa0] sm:$0xff]
    %v150 = vld [vmem:[#allocation7 + $0xa8] sm:$0xff]
    %v151 = vld [vmem:[#allocation7 + $0xb0] sm:$0xff]
    %v152 = vld [vmem:[#allocation7 + $0xb8] sm:$0xff]
    %v153 = vld [vmem:[#allocation7 + $0xc0] sm:$0xff]
    %v154 = vld [vmem:[#allocation7 + $0xc8] sm:$0xff]
    %v155 = vld [vmem:[#allocation7 + $0xd0] sm:$0xff]
    %v156 = vld [vmem:[#allocation7 + $0xd8] sm:$0xff]
    %v157 = vld [vmem:[#allocation7 + $0xe0] sm:$0xff]
    %v158 = vld [vmem:[#allocation7 + $0xe8] sm:$0xff]
    %v159 = vld [vmem:[#allocation7 + $0xf0] sm:$0xff]
    %v160 = vld [vmem:[#allocation7 + $0xf8] sm:$0xff]
    %v161 = vld [vmem:[#allocation5] sm:$0x3]
    %v162 = vld [vmem:[#allocation8] sm:$0x77]
    %164 = vst [vmem:[#allocation1] ss:$2 sm:$0xff] %v162
    %v165 = vld.sshfl [vmem:[#allocation1] sm:$0xff pattern:$0x75316420]
    %v166 = vld.sshfl [vmem:[#allocation1 + $0x8] sm:$0xff pattern:$0x75316420]
    %vm167 = vcmask 23552
    %v169 = vsel %vm167, %v161, 0
    %vm171 = vcmask 1042432
    %v172 = vsel %vm171, %v165, 0
    %v174 = vsel %vm171, %v166, 0
    %176 = vmatpush.msra.mxu0 0.0
    %177 = vmatpush.msra.mxu0 0.0
    %178 = vmatpush.msra.mxu0 0.0
    %179 = vmatpush.msra.mxu0 0.0
    %180 = vmatpush.msra.mxu0 0.0
    %181 = vmatpush.msra.mxu0 0.0
    %182 = vmatpush.msra.mxu0 0.0
    %183 = vmatpush.msra.mxu0 0.0
    %184 = vmatpush.msra.mxu0 0.0
    %185 = vmatpush.msra.mxu0 0.0
    %186 = vmatpush.msra.mxu0 0.0
    %187 = vmatpush.msra.mxu0 0.0
    %188 = vmatpush.msra.mxu0 0.0
    %189 = vmatpush.msra.mxu0 0.0
    %190 = vmatpush.msra.mxu0 0.0
    %v191 = vand.u32 %v172, 4294901760
    %192 = vmatpush.msra.mxu0 %v191
    %v193 = vand.u32 %v169, 4294901760
    %v194 = vsub.f32 %v169, %v193
    %v195 = vand.u32 %v194, 4294901760
    %v196 = vsub.f32 %v194, %v195
    %v197 = vand.u32 %v196, 4294901760
    %198 = vmatmul.f32.gmra.mxu0 %v197
    %v199 = vpop.f32.mrf.mxu0
    %v200 = vadd.f32 0.0, %v199
    %201 = vdwg.mxu0
    %202 = vmatpush.msra.mxu0 0.0
    %203 = vmatpush.msra.mxu0 0.0
    %204 = vmatpush.msra.mxu0 0.0
    %205 = vmatpush.msra.mxu0 0.0
    %206 = vmatpush.msra.mxu0 0.0
    %207 = vmatpush.msra.mxu0 0.0
    %208 = vmatpush.msra.mxu0 0.0
    %209 = vmatpush.msra.mxu0 0.0
    %210 = vmatpush.msra.mxu0 0.0
    %211 = vmatpush.msra.mxu0 0.0
    %212 = vmatpush.msra.mxu0 0.0
    %213 = vmatpush.msra.mxu0 0.0
    %214 = vmatpush.msra.mxu0 0.0
    %215 = vmatpush.msra.mxu0 0.0
    %216 = vmatpush.msra.mxu0 0.0
    %v217 = vand.u32 %v172, 4294901760
    %v218 = vsub.f32 %v172, %v217
    %v219 = vand.u32 %v218, 4294901760
    %v220 = vsub.f32 %v218, %v219
    %v221 = vand.u32 %v220, 4294901760
    %222 = vmatpush.msra.mxu0 %v221
    %v223 = vand.u32 %v169, 4294901760
    %224 = vmatmul.f32.gmra.mxu0 %v223
    %v225 = vpop.f32.mrf.mxu0
    %v226 = vadd.f32 %v200, %v225
    %227 = vdwg.mxu0
    %228 = vmatpush.msra.mxu0 0.0
    %229 = vmatpush.msra.mxu0 0.0
    %230 = vmatpush.msra.mxu0 0.0
    %231 = vmatpush.msra.mxu0 0.0
    %232 = vmatpush.msra.mxu0 0.0
    %233 = vmatpush.msra.mxu0 0.0
    %234 = vmatpush.msra.mxu0 0.0
    %235 = vmatpush.msra.mxu0 0.0
    %236 = vmatpush.msra.mxu0 0.0
    %237 = vmatpush.msra.mxu0 0.0
    %238 = vmatpush.msra.mxu0 0.0
    %239 = vmatpush.msra.mxu0 0.0
    %240 = vmatpush.msra.mxu0 0.0
    %241 = vmatpush.msra.mxu0 0.0
    %242 = vmatpush.msra.mxu0 0.0
    %v243 = vand.u32 %v172, 4294901760
    %v244 = vsub.f32 %v172, %v243
    %245 = vmatpush.msra.mxu0 %v244
    %v246 = vand.u32 %v169, 4294901760
    %v247 = vsub.f32 %v169, %v246
    %248 = vmatmul.f32.gmra.mxu0 %v247
    %v249 = vpop.f32.mrf.mxu0
    %v250 = vadd.f32 %v226, %v249
    %251 = vdwg.mxu0
    %252 = vmatpush.msra.mxu0 0.0
    %253 = vmatpush.msra.mxu0 0.0
    %254 = vmatpush.msra.mxu0 0.0
    %255 = vmatpush.msra.mxu0 0.0
    %256 = vmatpush.msra.mxu0 0.0
    %257 = vmatpush.msra.mxu0 0.0
    %258 = vmatpush.msra.mxu0 0.0
    %259 = vmatpush.msra.mxu0 0.0
    %260 = vmatpush.msra.mxu0 0.0
    %261 = vmatpush.msra.mxu0 0.0
    %262 = vmatpush.msra.mxu0 0.0
    %263 = vmatpush.msra.mxu0 0.0
    %264 = vmatpush.msra.mxu0 0.0
    %265 = vmatpush.msra.mxu0 0.0
    %266 = vmatpush.msra.mxu0 0.0
    %v267 = vand.u32 %v172, 4294901760
    %268 = vmatpush.msra.mxu0 %v267
    %v269 = vand.u32 %v169, 4294901760
    %v270 = vsub.f32 %v169, %v269
    %v271 = vand.u32 %v270, 4294901760
    %272 = vmatmul.f32.gmra.mxu0 %v271
    %v273 = vpop.f32.mrf.mxu0
    %v274 = vadd.f32 %v250, %v273
    %275 = vdwg.mxu0
    %276 = vmatpush.msra.mxu0 0.0
    %277 = vmatpush.msra.mxu0 0.0
    %278 = vmatpush.msra.mxu0 0.0
    %279 = vmatpush.msra.mxu0 0.0
    %280 = vmatpush.msra.mxu0 0.0
    %281 = vmatpush.msra.mxu0 0.0
    %282 = vmatpush.msra.mxu0 0.0
    %283 = vmatpush.msra.mxu0 0.0
    %284 = vmatpush.msra.mxu0 0.0
    %285 = vmatpush.msra.mxu0 0.0
    %286 = vmatpush.msra.mxu0 0.0
    %287 = vmatpush.msra.mxu0 0.0
    %288 = vmatpush.msra.mxu0 0.0
    %289 = vmatpush.msra.mxu0 0.0
    %290 = vmatpush.msra.mxu0 0.0
    %v291 = vand.u32 %v172, 4294901760
    %v292 = vsub.f32 %v172, %v291
    %v293 = vand.u32 %v292, 4294901760
    %294 = vmatpush.msra.mxu0 %v293
    %v295 = vand.u32 %v169, 4294901760
    %296 = vmatmul.f32.gmra.mxu0 %v295
    %v297 = vpop.f32.mrf.mxu0
    %v298 = vadd.f32 %v274, %v297
    %299 = vdwg.mxu0
    %300 = vmatpush.msra.mxu0 0.0
    %301 = vmatpush.msra.mxu0 0.0
    %302 = vmatpush.msra.mxu0 0.0
    %303 = vmatpush.msra.mxu0 0.0
    %304 = vmatpush.msra.mxu0 0.0
    %305 = vmatpush.msra.mxu0 0.0
    %306 = vmatpush.msra.mxu0 0.0
    %307 = vmatpush.msra.mxu0 0.0
    %308 = vmatpush.msra.mxu0 0.0
    %309 = vmatpush.msra.mxu0 0.0
    %310 = vmatpush.msra.mxu0 0.0
    %311 = vmatpush.msra.mxu0 0.0
    %312 = vmatpush.msra.mxu0 0.0
    %313 = vmatpush.msra.mxu0 0.0
    %314 = vmatpush.msra.mxu0 0.0
    %v315 = vand.u32 %v172, 4294901760
    %316 = vmatpush.msra.mxu0 %v315
    %v317 = vand.u32 %v169, 4294901760
    %318 = vmatmul.f32.gmra.mxu0 %v317
    %v319 = vpop.f32.mrf.mxu0
    %v320 = vadd.f32 %v298, %v319
    %321 = vdwg.mxu0
    %322 = vmatpush.msra.mxu0 0.0
    %323 = vmatpush.msra.mxu0 0.0
    %324 = vmatpush.msra.mxu0 0.0
    %325 = vmatpush.msra.mxu0 0.0
    %326 = vmatpush.msra.mxu0 0.0
    %327 = vmatpush.msra.mxu0 0.0
    %328 = vmatpush.msra.mxu0 0.0
    %329 = vmatpush.msra.mxu0 0.0
    %330 = vmatpush.msra.mxu0 0.0
    %331 = vmatpush.msra.mxu0 0.0
    %332 = vmatpush.msra.mxu0 0.0
    %333 = vmatpush.msra.mxu0 0.0
    %334 = vmatpush.msra.mxu0 0.0
    %335 = vmatpush.msra.mxu0 0.0
    %336 = vmatpush.msra.mxu0 0.0
    %v337 = vand.u32 %v174, 4294901760
    %338 = vmatpush.msra.mxu0 %v337
    %v339 = vand.u32 %v169, 4294901760
    %v340 = vsub.f32 %v169, %v339
    %v341 = vand.u32 %v340, 4294901760
    %v342 = vsub.f32 %v340, %v341
    %v343 = vand.u32 %v342, 4294901760
    %344 = vmatmul.f32.gmra.mxu0 %v343
    %v345 = vpop.f32.mrf.mxu0
    %v346 = vadd.f32 0.0, %v345
    %347 = vdwg.mxu0
    %348 = vmatpush.msra.mxu0 0.0
    %349 = vmatpush.msra.mxu0 0.0
    %350 = vmatpush.msra.mxu0 0.0
    %351 = vmatpush.msra.mxu0 0.0
    %352 = vmatpush.msra.mxu0 0.0
    %353 = vmatpush.msra.mxu0 0.0
    %354 = vmatpush.msra.mxu0 0.0
    %355 = vmatpush.msra.mxu0 0.0
    %356 = vmatpush.msra.mxu0 0.0
    %357 = vmatpush.msra.mxu0 0.0
    %358 = vmatpush.msra.mxu0 0.0
    %359 = vmatpush.msra.mxu0 0.0
    %360 = vmatpush.msra.mxu0 0.0
    %361 = vmatpush.msra.mxu0 0.0
    %362 = vmatpush.msra.mxu0 0.0
    %v363 = vand.u32 %v174, 4294901760
    %v364 = vsub.f32 %v174, %v363
    %v365 = vand.u32 %v364, 4294901760
    %v366 = vsub.f32 %v364, %v365
    %v367 = vand.u32 %v366, 4294901760
    %368 = vmatpush.msra.mxu0 %v367
    %v369 = vand.u32 %v169, 4294901760
    %370 = vmatmul.f32.gmra.mxu0 %v369
    %v371 = vpop.f32.mrf.mxu0
    %v372 = vadd.f32 %v346, %v371
    %373 = vdwg.mxu0
    %374 = vmatpush.msra.mxu0 0.0
    %375 = vmatpush.msra.mxu0 0.0
    %376 = vmatpush.msra.mxu0 0.0
    %377 = vmatpush.msra.mxu0 0.0
    %378 = vmatpush.msra.mxu0 0.0
    %379 = vmatpush.msra.mxu0 0.0
    %380 = vmatpush.msra.mxu0 0.0
    %381 = vmatpush.msra.mxu0 0.0
    %382 = vmatpush.msra.mxu0 0.0
    %383 = vmatpush.msra.mxu0 0.0
    %384 = vmatpush.msra.mxu0 0.0
    %385 = vmatpush.msra.mxu0 0.0
    %386 = vmatpush.msra.mxu0 0.0
    %387 = vmatpush.msra.mxu0 0.0
    %388 = vmatpush.msra.mxu0 0.0
    %v389 = vand.u32 %v174, 4294901760
    %v390 = vsub.f32 %v174, %v389
    %391 = vmatpush.msra.mxu0 %v390
    %v392 = vand.u32 %v169, 4294901760
    %v393 = vsub.f32 %v169, %v392
    %394 = vmatmul.f32.gmra.mxu0 %v393
    %v395 = vpop.f32.mrf.mxu0
    %v396 = vadd.f32 %v372, %v395
    %397 = vdwg.mxu0
    %398 = vmatpush.msra.mxu0 0.0
    %399 = vmatpush.msra.mxu0 0.0
    %400 = vmatpush.msra.mxu0 0.0
    %401 = vmatpush.msra.mxu0 0.0
    %402 = vmatpush.msra.mxu0 0.0
    %403 = vmatpush.msra.mxu0 0.0
    %404 = vmatpush.msra.mxu0 0.0
    %405 = vmatpush.msra.mxu0 0.0
    %406 = vmatpush.msra.mxu0 0.0
    %407 = vmatpush.msra.mxu0 0.0
    %408 = vmatpush.msra.mxu0 0.0
    %409 = vmatpush.msra.mxu0 0.0
    %410 = vmatpush.msra.mxu0 0.0
    %411 = vmatpush.msra.mxu0 0.0
    %412 = vmatpush.msra.mxu0 0.0
    %v413 = vand.u32 %v174, 4294901760
    %414 = vmatpush.msra.mxu0 %v413
    %v415 = vand.u32 %v169, 4294901760
    %v416 = vsub.f32 %v169, %v415
    %v417 = vand.u32 %v416, 4294901760
    %418 = vmatmul.f32.gmra.mxu0 %v417
    %v419 = vpop.f32.mrf.mxu0
    %v420 = vadd.f32 %v396, %v419
    %421 = vdwg.mxu0
    %422 = vmatpush.msra.mxu0 0.0
    %423 = vmatpush.msra.mxu0 0.0
    %424 = vmatpush.msra.mxu0 0.0
    %425 = vmatpush.msra.mxu0 0.0
    %426 = vmatpush.msra.mxu0 0.0
    %427 = vmatpush.msra.mxu0 0.0
    %428 = vmatpush.msra.mxu0 0.0
    %429 = vmatpush.msra.mxu0 0.0
    %430 = vmatpush.msra.mxu0 0.0
    %431 = vmatpush.msra.mxu0 0.0
    %432 = vmatpush.msra.mxu0 0.0
    %433 = vmatpush.msra.mxu0 0.0
    %434 = vmatpush.msra.mxu0 0.0
    %435 = vmatpush.msra.mxu0 0.0
    %436 = vmatpush.msra.mxu0 0.0
    %v437 = vand.u32 %v174, 4294901760
    %v438 = vsub.f32 %v174, %v437
    %v439 = vand.u32 %v438, 4294901760
    %440 = vmatpush.msra.mxu0 %v439
    %v441 = vand.u32 %v169, 4294901760
    %442 = vmatmul.f32.gmra.mxu0 %v441
    %v443 = vpop.f32.mrf.mxu0
    %v444 = vadd.f32 %v420, %v443
    %445 = vdwg.mxu0
    %446 = vmatpush.msra.mxu0 0.0
    %447 = vmatpush.msra.mxu0 0.0
    %448 = vmatpush.msra.mxu0 0.0
    %449 = vmatpush.msra.mxu0 0.0
    %450 = vmatpush.msra.mxu0 0.0
    %451 = vmatpush.msra.mxu0 0.0
    %452 = vmatpush.msra.mxu0 0.0
    %453 = vmatpush.msra.mxu0 0.0
    %454 = vmatpush.msra.mxu0 0.0
    %455 = vmatpush.msra.mxu0 0.0
    %456 = vmatpush.msra.mxu0 0.0
    %457 = vmatpush.msra.mxu0 0.0
    %458 = vmatpush.msra.mxu0 0.0
    %459 = vmatpush.msra.mxu0 0.0
    %460 = vmatpush.msra.mxu0 0.0
    %v461 = vand.u32 %v174, 4294901760
    %462 = vmatpush.msra.mxu0 %v461
    %v463 = vand.u32 %v169, 4294901760
    %464 = vmatmul.f32.gmra.mxu0 %v463
    %v465 = vpop.f32.mrf.mxu0
    %v466 = vadd.f32 %v444, %v465
    %467 = vdwg.mxu0
    %v468 = vand.u32 %v159, 4294901760
    %469 = vmatpush.msra.mxu0 %v468
    %v470 = vand.u32 %v157, 4294901760
    %471 = vmatpush.msra.mxu0 %v470
    %v472 = vand.u32 %v155, 4294901760
    %473 = vmatpush.msra.mxu0 %v472
    %v474 = vand.u32 %v153, 4294901760
    %475 = vmatpush.msra.mxu0 %v474
    %v476 = vand.u32 %v151, 4294901760
    %477 = vmatpush.msra.mxu0 %v476
    %v478 = vand.u32 %v149, 4294901760
    %479 = vmatpush.msra.mxu0 %v478
    %v480 = vand.u32 %v147, 4294901760
    %481 = vmatpush.msra.mxu0 %v480
    %v482 = vand.u32 %v145, 4294901760
    %483 = vmatpush.msra.mxu0 %v482
    %v484 = vand.u32 %v143, 4294901760
    %485 = vmatpush.msra.mxu0 %v484
    %v486 = vand.u32 %v141, 4294901760
    %487 = vmatpush.msra.mxu0 %v486
    %v488 = vand.u32 %v139, 4294901760
    %489 = vmatpush.msra.mxu0 %v488
    %v490 = vand.u32 %v137, 4294901760
    %491 = vmatpush.msra.mxu0 %v490
    %v492 = vand.u32 %v135, 4294901760
    %493 = vmatpush.msra.mxu0 %v492
    %v494 = vand.u32 %v133, 4294901760
    %495 = vmatpush.msra.mxu0 %v494
    %v496 = vand.u32 %v131, 4294901760
    %497 = vmatpush.msra.mxu0 %v496
    %v498 = vand.u32 %v129, 4294901760
    %499 = vmatpush.msra.mxu0 %v498
    %v500 = vand.u32 %v128, 4294901760
    %v501 = vsub.f32 %v128, %v500
    %v502 = vand.u32 %v501, 4294901760
    %v503 = vsub.f32 %v501, %v502
    %v504 = vand.u32 %v503, 4294901760
    %505 = vmatmul.f32.gmra.mxu0 %v504
    %v506 = vpop.f32.mrf.mxu0
    %v507 = vadd.f32 %v320, %v506
    %508 = vdwg.mxu0
    %v509 = vand.u32 %v159, 4294901760
    %v510 = vsub.f32 %v159, %v509
    %v511 = vand.u32 %v510, 4294901760
    %v512 = vsub.f32 %v510, %v511
    %v513 = vand.u32 %v512, 4294901760
    %514 = vmatpush.msra.mxu0 %v513
    %v515 = vand.u32 %v157, 4294901760
    %v516 = vsub.f32 %v157, %v515
    %v517 = vand.u32 %v516, 4294901760
    %v518 = vsub.f32 %v516, %v517
    %v519 = vand.u32 %v518, 4294901760
    %520 = vmatpush.msra.mxu0 %v519
    %v521 = vand.u32 %v155, 4294901760
    %v522 = vsub.f32 %v155, %v521
    %v523 = vand.u32 %v522, 4294901760
    %v524 = vsub.f32 %v522, %v523
    %v525 = vand.u32 %v524, 4294901760
    %526 = vmatpush.msra.mxu0 %v525
    %v527 = vand.u32 %v153, 4294901760
    %v528 = vsub.f32 %v153, %v527
    %v529 = vand.u32 %v528, 4294901760
    %v530 = vsub.f32 %v528, %v529
    %v531 = vand.u32 %v530, 4294901760
    %532 = vmatpush.msra.mxu0 %v531
    %v533 = vand.u32 %v151, 4294901760
    %v534 = vsub.f32 %v151, %v533
    %v535 = vand.u32 %v534, 4294901760
    %v536 = vsub.f32 %v534, %v535
    %v537 = vand.u32 %v536, 4294901760
    %538 = vmatpush.msra.mxu0 %v537
    %v539 = vand.u32 %v149, 4294901760
    %v540 = vsub.f32 %v149, %v539
    %v541 = vand.u32 %v540, 4294901760
    %v542 = vsub.f32 %v540, %v541
    %v543 = vand.u32 %v542, 4294901760
    %544 = vmatpush.msra.mxu0 %v543
    %v545 = vand.u32 %v147, 4294901760
    %v546 = vsub.f32 %v147, %v545
    %v547 = vand.u32 %v546, 4294901760
    %v548 = vsub.f32 %v546, %v547
    %v549 = vand.u32 %v548, 4294901760
    %550 = vmatpush.msra.mxu0 %v549
    %v551 = vand.u32 %v145, 4294901760
    %v552 = vsub.f32 %v145, %v551
    %v553 = vand.u32 %v552, 4294901760
    %v554 = vsub.f32 %v552, %v553
    %v555 = vand.u32 %v554, 4294901760
    %556 = vmatpush.msra.mxu0 %v555
    %v557 = vand.u32 %v143, 4294901760
    %v558 = vsub.f32 %v143, %v557
    %v559 = vand.u32 %v558, 4294901760
    %v560 = vsub.f32 %v558, %v559
    %v561 = vand.u32 %v560, 4294901760
    %562 = vmatpush.msra.mxu0 %v561
    %v563 = vand.u32 %v141, 4294901760
    %v564 = vsub.f32 %v141, %v563
    %v565 = vand.u32 %v564, 4294901760
    %v566 = vsub.f32 %v564, %v565
    %v567 = vand.u32 %v566, 4294901760
    %568 = vmatpush.msra.mxu0 %v567
    %v569 = vand.u32 %v139, 4294901760
    %v570 = vsub.f32 %v139, %v569
    %v571 = vand.u32 %v570, 4294901760
    %v572 = vsub.f32 %v570, %v571
    %v573 = vand.u32 %v572, 4294901760
    %574 = vmatpush.msra.mxu0 %v573
    %v575 = vand.u32 %v137, 4294901760
    %v576 = vsub.f32 %v137, %v575
    %v577 = vand.u32 %v576, 4294901760
    %v578 = vsub.f32 %v576, %v577
    %v579 = vand.u32 %v578, 4294901760
    %580 = vmatpush.msra.mxu0 %v579
    %v581 = vand.u32 %v135, 4294901760
    %v582 = vsub.f32 %v135, %v581
    %v583 = vand.u32 %v582, 4294901760
    %v584 = vsub.f32 %v582, %v583
    %v585 = vand.u32 %v584, 4294901760
    %586 = vmatpush.msra.mxu0 %v585
    %v587 = vand.u32 %v133, 4294901760
    %v588 = vsub.f32 %v133, %v587
    %v589 = vand.u32 %v588, 4294901760
    %v590 = vsub.f32 %v588, %v589
    %v591 = vand.u32 %v590, 4294901760
    %592 = vmatpush.msra.mxu0 %v591
    %v593 = vand.u32 %v131, 4294901760
    %v594 = vsub.f32 %v131, %v593
    %v595 = vand.u32 %v594, 4294901760
    %v596 = vsub.f32 %v594, %v595
    %v597 = vand.u32 %v596, 4294901760
    %598 = vmatpush.msra.mxu0 %v597
    %v599 = vand.u32 %v129, 4294901760
    %v600 = vsub.f32 %v129, %v599
    %v601 = vand.u32 %v600, 4294901760
    %v602 = vsub.f32 %v600, %v601
    %v603 = vand.u32 %v602, 4294901760
    %604 = vmatpush.msra.mxu0 %v603
    %v605 = vand.u32 %v128, 4294901760
    %606 = vmatmul.f32.gmra.mxu0 %v605
    %v607 = vpop.f32.mrf.mxu0
    %v608 = vadd.f32 %v507, %v607
    %609 = vdwg.mxu0
    %v610 = vand.u32 %v159, 4294901760
    %v611 = vsub.f32 %v159, %v610
    %612 = vmatpush.msra.mxu0 %v611
    %v613 = vand.u32 %v157, 4294901760
    %v614 = vsub.f32 %v157, %v613
    %615 = vmatpush.msra.mxu0 %v614
    %v616 = vand.u32 %v155, 4294901760
    %v617 = vsub.f32 %v155, %v616
    %618 = vmatpush.msra.mxu0 %v617
    %v619 = vand.u32 %v153, 4294901760
    %v620 = vsub.f32 %v153, %v619
    %621 = vmatpush.msra.mxu0 %v620
    %v622 = vand.u32 %v151, 4294901760
    %v623 = vsub.f32 %v151, %v622
    %624 = vmatpush.msra.mxu0 %v623
    %v625 = vand.u32 %v149, 4294901760
    %v626 = vsub.f32 %v149, %v625
    %627 = vmatpush.msra.mxu0 %v626
    %v628 = vand.u32 %v147, 4294901760
    %v629 = vsub.f32 %v147, %v628
    %630 = vmatpush.msra.mxu0 %v629
    %v631 = vand.u32 %v145, 4294901760
    %v632 = vsub.f32 %v145, %v631
    %633 = vmatpush.msra.mxu0 %v632
    %v634 = vand.u32 %v143, 4294901760
    %v635 = vsub.f32 %v143, %v634
    %636 = vmatpush.msra.mxu0 %v635
    %v637 = vand.u32 %v141, 4294901760
    %v638 = vsub.f32 %v141, %v637
    %639 = vmatpush.msra.mxu0 %v638
    %v640 = vand.u32 %v139, 4294901760
    %v641 = vsub.f32 %v139, %v640
    %642 = vmatpush.msra.mxu0 %v641
    %v643 = vand.u32 %v137, 4294901760
    %v644 = vsub.f32 %v137, %v643
    %645 = vmatpush.msra.mxu0 %v644
    %v646 = vand.u32 %v135, 4294901760
    %v647 = vsub.f32 %v135, %v646
    %648 = vmatpush.msra.mxu0 %v647
    %v649 = vand.u32 %v133, 4294901760
    %v650 = vsub.f32 %v133, %v649
    %651 = vmatpush.msra.mxu0 %v650
    %v652 = vand.u32 %v131, 4294901760
    %v653 = vsub.f32 %v131, %v652
    %654 = vmatpush.msra.mxu0 %v653
    %v655 = vand.u32 %v129, 4294901760
    %v656 = vsub.f32 %v129, %v655
    %657 = vmatpush.msra.mxu0 %v656
    %v658 = vand.u32 %v128, 4294901760
    %v659 = vsub.f32 %v128, %v658
    %660 = vmatmul.f32.gmra.mxu0 %v659
    %v661 = vpop.f32.mrf.mxu0
    %v662 = vadd.f32 %v608, %v661
    %663 = vdwg.mxu0
    %v664 = vand.u32 %v159, 4294901760
    %665 = vmatpush.msra.mxu0 %v664
    %v666 = vand.u32 %v157, 4294901760
    %667 = vmatpush.msra.mxu0 %v666
    %v668 = vand.u32 %v155, 4294901760
    %669 = vmatpush.msra.mxu0 %v668
    %v670 = vand.u32 %v153, 4294901760
    %671 = vmatpush.msra.mxu0 %v670
    %v672 = vand.u32 %v151, 4294901760
    %673 = vmatpush.msra.mxu0 %v672
    %v674 = vand.u32 %v149, 4294901760
    %675 = vmatpush.msra.mxu0 %v674
    %v676 = vand.u32 %v147, 4294901760
    %677 = vmatpush.msra.mxu0 %v676
    %v678 = vand.u32 %v145, 4294901760
    %679 = vmatpush.msra.mxu0 %v678
    %v680 = vand.u32 %v143, 4294901760
    %681 = vmatpush.msra.mxu0 %v680
    %v682 = vand.u32 %v141, 4294901760
    %683 = vmatpush.msra.mxu0 %v682
    %v684 = vand.u32 %v139, 4294901760
    %685 = vmatpush.msra.mxu0 %v684
    %v686 = vand.u32 %v137, 4294901760
    %687 = vmatpush.msra.mxu0 %v686
    %v688 = vand.u32 %v135, 4294901760
    %689 = vmatpush.msra.mxu0 %v688
    %v690 = vand.u32 %v133, 4294901760
    %691 = vmatpush.msra.mxu0 %v690
    %v692 = vand.u32 %v131, 4294901760
    %693 = vmatpush.msra.mxu0 %v692
    %v694 = vand.u32 %v129, 4294901760
    %695 = vmatpush.msra.mxu0 %v694
    %v696 = vand.u32 %v128, 4294901760
    %v697 = vsub.f32 %v128, %v696
    %v698 = vand.u32 %v697, 4294901760
    %699 = vmatmul.f32.gmra.mxu0 %v698
    %v700 = vpop.f32.mrf.mxu0
    %v701 = vadd.f32 %v662, %v700
    %702 = vdwg.mxu0
    %v703 = vand.u32 %v159, 4294901760
    %v704 = vsub.f32 %v159, %v703
    %v705 = vand.u32 %v704, 4294901760
    %706 = vmatpush.msra.mxu0 %v705
    %v707 = vand.u32 %v157, 4294901760
    %v708 = vsub.f32 %v157, %v707
    %v709 = vand.u32 %v708, 4294901760
    %710 = vmatpush.msra.mxu0 %v709
    %v711 = vand.u32 %v155, 4294901760
    %v712 = vsub.f32 %v155, %v711
    %v713 = vand.u32 %v712, 4294901760
    %714 = vmatpush.msra.mxu0 %v713
    %v715 = vand.u32 %v153, 4294901760
    %v716 = vsub.f32 %v153, %v715
    %v717 = vand.u32 %v716, 4294901760
    %718 = vmatpush.msra.mxu0 %v717
    %v719 = vand.u32 %v151, 4294901760
    %v720 = vsub.f32 %v151, %v719
    %v721 = vand.u32 %v720, 4294901760
    %722 = vmatpush.msra.mxu0 %v721
    %v723 = vand.u32 %v149, 4294901760
    %v724 = vsub.f32 %v149, %v723
    %v725 = vand.u32 %v724, 4294901760
    %726 = vmatpush.msra.mxu0 %v725
    %v727 = vand.u32 %v147, 4294901760
    %v728 = vsub.f32 %v147, %v727
    %v729 = vand.u32 %v728, 4294901760
    %730 = vmatpush.msra.mxu0 %v729
    %v731 = vand.u32 %v145, 4294901760
    %v732 = vsub.f32 %v145, %v731
    %v733 = vand.u32 %v732, 4294901760
    %734 = vmatpush.msra.mxu0 %v733
    %v735 = vand.u32 %v143, 4294901760
    %v736 = vsub.f32 %v143, %v735
    %v737 = vand.u32 %v736, 4294901760
    %738 = vmatpush.msra.mxu0 %v737
    %v739 = vand.u32 %v141, 4294901760
    %v740 = vsub.f32 %v141, %v739
    %v741 = vand.u32 %v740, 4294901760
    %742 = vmatpush.msra.mxu0 %v741
    %v743 = vand.u32 %v139, 4294901760
    %v744 = vsub.f32 %v139, %v743
    %v745 = vand.u32 %v744, 4294901760
    %746 = vmatpush.msra.mxu0 %v745
    %v747 = vand.u32 %v137, 4294901760
    %v748 = vsub.f32 %v137, %v747
    %v749 = vand.u32 %v748, 4294901760
    %750 = vmatpush.msra.mxu0 %v749
    %v751 = vand.u32 %v135, 4294901760
    %v752 = vsub.f32 %v135, %v751
    %v753 = vand.u32 %v752, 4294901760
    %754 = vmatpush.msra.mxu0 %v753
    %v755 = vand.u32 %v133, 4294901760
    %v756 = vsub.f32 %v133, %v755
    %v757 = vand.u32 %v756, 4294901760
    %758 = vmatpush.msra.mxu0 %v757
    %v759 = vand.u32 %v131, 4294901760
    %v760 = vsub.f32 %v131, %v759
    %v761 = vand.u32 %v760, 4294901760
    %762 = vmatpush.msra.mxu0 %v761
    %v763 = vand.u32 %v129, 4294901760
    %v764 = vsub.f32 %v129, %v763
    %v765 = vand.u32 %v764, 4294901760
    %766 = vmatpush.msra.mxu0 %v765
    %v767 = vand.u32 %v128, 4294901760
    %768 = vmatmul.f32.gmra.mxu0 %v767
    %v769 = vpop.f32.mrf.mxu0
    %v770 = vadd.f32 %v701, %v769
    %771 = vdwg.mxu0
    %v772 = vand.u32 %v159, 4294901760
    %773 = vmatpush.msra.mxu0 %v772
    %v774 = vand.u32 %v157, 4294901760
    %775 = vmatpush.msra.mxu0 %v774
    %v776 = vand.u32 %v155, 4294901760
    %777 = vmatpush.msra.mxu0 %v776
    %v778 = vand.u32 %v153, 4294901760
    %779 = vmatpush.msra.mxu0 %v778
    %v780 = vand.u32 %v151, 4294901760
    %781 = vmatpush.msra.mxu0 %v780
    %v782 = vand.u32 %v149, 4294901760
    %783 = vmatpush.msra.mxu0 %v782
    %v784 = vand.u32 %v147, 4294901760
    %785 = vmatpush.msra.mxu0 %v784
    %v786 = vand.u32 %v145, 4294901760
    %787 = vmatpush.msra.mxu0 %v786
    %v788 = vand.u32 %v143, 4294901760
    %789 = vmatpush.msra.mxu0 %v788
    %v790 = vand.u32 %v141, 4294901760
    %791 = vmatpush.msra.mxu0 %v790
    %v792 = vand.u32 %v139, 4294901760
    %793 = vmatpush.msra.mxu0 %v792
    %v794 = vand.u32 %v137, 4294901760
    %795 = vmatpush.msra.mxu0 %v794
    %v796 = vand.u32 %v135, 4294901760
    %797 = vmatpush.msra.mxu0 %v796
    %v798 = vand.u32 %v133, 4294901760
    %799 = vmatpush.msra.mxu0 %v798
    %v800 = vand.u32 %v131, 4294901760
    %801 = vmatpush.msra.mxu0 %v800
    %v802 = vand.u32 %v129, 4294901760
    %803 = vmatpush.msra.mxu0 %v802
    %v804 = vand.u32 %v128, 4294901760
    %805 = vmatmul.f32.gmra.mxu0 %v804
    %v806 = vpop.f32.mrf.mxu0
    %v807 = vadd.f32 %v770, %v806
    %808 = vdwg.mxu0
    %v809 = vand.u32 %v160, 4294901760
    %810 = vmatpush.msra.mxu0 %v809
    %v811 = vand.u32 %v158, 4294901760
    %812 = vmatpush.msra.mxu0 %v811
    %v813 = vand.u32 %v156, 4294901760
    %814 = vmatpush.msra.mxu0 %v813
    %v815 = vand.u32 %v154, 4294901760
    %816 = vmatpush.msra.mxu0 %v815
    %v817 = vand.u32 %v152, 4294901760
    %818 = vmatpush.msra.mxu0 %v817
    %v819 = vand.u32 %v150, 4294901760
    %820 = vmatpush.msra.mxu0 %v819
    %v821 = vand.u32 %v148, 4294901760
    %822 = vmatpush.msra.mxu0 %v821
    %v823 = vand.u32 %v146, 4294901760
    %824 = vmatpush.msra.mxu0 %v823
    %v825 = vand.u32 %v144, 4294901760
    %826 = vmatpush.msra.mxu0 %v825
    %v827 = vand.u32 %v142, 4294901760
    %828 = vmatpush.msra.mxu0 %v827
    %v829 = vand.u32 %v140, 4294901760
    %830 = vmatpush.msra.mxu0 %v829
    %v831 = vand.u32 %v138, 4294901760
    %832 = vmatpush.msra.mxu0 %v831
    %v833 = vand.u32 %v136, 4294901760
    %834 = vmatpush.msra.mxu0 %v833
    %v835 = vand.u32 %v134, 4294901760
    %836 = vmatpush.msra.mxu0 %v835
    %v837 = vand.u32 %v132, 4294901760
    %838 = vmatpush.msra.mxu0 %v837
    %v839 = vand.u32 %v130, 4294901760
    %840 = vmatpush.msra.mxu0 %v839
    %v841 = vand.u32 %v128, 4294901760
    %v842 = vsub.f32 %v128, %v841
    %v843 = vand.u32 %v842, 4294901760
    %v844 = vsub.f32 %v842, %v843
    %v845 = vand.u32 %v844, 4294901760
    %846 = vmatmul.f32.gmra.mxu0 %v845
    %v847 = vpop.f32.mrf.mxu0
    %v848 = vadd.f32 %v466, %v847
    %849 = vdwg.mxu0
    %v850 = vand.u32 %v160, 4294901760
    %v851 = vsub.f32 %v160, %v850
    %v852 = vand.u32 %v851, 4294901760
    %v853 = vsub.f32 %v851, %v852
    %v854 = vand.u32 %v853, 4294901760
    %855 = vmatpush.msra.mxu0 %v854
    %v856 = vand.u32 %v158, 4294901760
    %v857 = vsub.f32 %v158, %v856
    %v858 = vand.u32 %v857, 4294901760
    %v859 = vsub.f32 %v857, %v858
    %v860 = vand.u32 %v859, 4294901760
    %861 = vmatpush.msra.mxu0 %v860
    %v862 = vand.u32 %v156, 4294901760
    %v863 = vsub.f32 %v156, %v862
    %v864 = vand.u32 %v863, 4294901760
    %v865 = vsub.f32 %v863, %v864
    %v866 = vand.u32 %v865, 4294901760
    %867 = vmatpush.msra.mxu0 %v866
    %v868 = vand.u32 %v154, 4294901760
    %v869 = vsub.f32 %v154, %v868
    %v870 = vand.u32 %v869, 4294901760
    %v871 = vsub.f32 %v869, %v870
    %v872 = vand.u32 %v871, 4294901760
    %873 = vmatpush.msra.mxu0 %v872
    %v874 = vand.u32 %v152, 4294901760
    %v875 = vsub.f32 %v152, %v874
    %v876 = vand.u32 %v875, 4294901760
    %v877 = vsub.f32 %v875, %v876
    %v878 = vand.u32 %v877, 4294901760
    %879 = vmatpush.msra.mxu0 %v878
    %v880 = vand.u32 %v150, 4294901760
    %v881 = vsub.f32 %v150, %v880
    %v882 = vand.u32 %v881, 4294901760
    %v883 = vsub.f32 %v881, %v882
    %v884 = vand.u32 %v883, 4294901760
    %885 = vmatpush.msra.mxu0 %v884
    %v886 = vand.u32 %v148, 4294901760
    %v887 = vsub.f32 %v148, %v886
    %v888 = vand.u32 %v887, 4294901760
    %v889 = vsub.f32 %v887, %v888
    %v890 = vand.u32 %v889, 4294901760
    %891 = vmatpush.msra.mxu0 %v890
    %v892 = vand.u32 %v146, 4294901760
    %v893 = vsub.f32 %v146, %v892
    %v894 = vand.u32 %v893, 4294901760
    %v895 = vsub.f32 %v893, %v894
    %v896 = vand.u32 %v895, 4294901760
    %897 = vmatpush.msra.mxu0 %v896
    %v898 = vand.u32 %v144, 4294901760
    %v899 = vsub.f32 %v144, %v898
    %v900 = vand.u32 %v899, 4294901760
    %v901 = vsub.f32 %v899, %v900
    %v902 = vand.u32 %v901, 4294901760
    %903 = vmatpush.msra.mxu0 %v902
    %v904 = vand.u32 %v142, 4294901760
    %v905 = vsub.f32 %v142, %v904
    %v906 = vand.u32 %v905, 4294901760
    %v907 = vsub.f32 %v905, %v906
    %v908 = vand.u32 %v907, 4294901760
    %909 = vmatpush.msra.mxu0 %v908
    %v910 = vand.u32 %v140, 4294901760
    %v911 = vsub.f32 %v140, %v910
    %v912 = vand.u32 %v911, 4294901760
    %v913 = vsub.f32 %v911, %v912
    %v914 = vand.u32 %v913, 4294901760
    %915 = vmatpush.msra.mxu0 %v914
    %v916 = vand.u32 %v138, 4294901760
    %v917 = vsub.f32 %v138, %v916
    %v918 = vand.u32 %v917, 4294901760
    %v919 = vsub.f32 %v917, %v918
    %v920 = vand.u32 %v919, 4294901760
    %921 = vmatpush.msra.mxu0 %v920
    %v922 = vand.u32 %v136, 4294901760
    %v923 = vsub.f32 %v136, %v922
    %v924 = vand.u32 %v923, 4294901760
    %v925 = vsub.f32 %v923, %v924
    %v926 = vand.u32 %v925, 4294901760
    %927 = vmatpush.msra.mxu0 %v926
    %v928 = vand.u32 %v134, 4294901760
    %v929 = vsub.f32 %v134, %v928
    %v930 = vand.u32 %v929, 4294901760
    %v931 = vsub.f32 %v929, %v930
    %v932 = vand.u32 %v931, 4294901760
    %933 = vmatpush.msra.mxu0 %v932
    %v934 = vand.u32 %v132, 4294901760
    %v935 = vsub.f32 %v132, %v934
    %v936 = vand.u32 %v935, 4294901760
    %v937 = vsub.f32 %v935, %v936
    %v938 = vand.u32 %v937, 4294901760
    %939 = vmatpush.msra.mxu0 %v938
    %v940 = vand.u32 %v130, 4294901760
    %v941 = vsub.f32 %v130, %v940
    %v942 = vand.u32 %v941, 4294901760
    %v943 = vsub.f32 %v941, %v942
    %v944 = vand.u32 %v943, 4294901760
    %945 = vmatpush.msra.mxu0 %v944
    %v946 = vand.u32 %v128, 4294901760
    %947 = vmatmul.f32.gmra.mxu0 %v946
    %v948 = vpop.f32.mrf.mxu0
    %v949 = vadd.f32 %v848, %v948
    %950 = vdwg.mxu0
    %v951 = vand.u32 %v160, 4294901760
    %v952 = vsub.f32 %v160, %v951
    %953 = vmatpush.msra.mxu0 %v952
    %v954 = vand.u32 %v158, 4294901760
    %v955 = vsub.f32 %v158, %v954
    %956 = vmatpush.msra.mxu0 %v955
    %v957 = vand.u32 %v156, 4294901760
    %v958 = vsub.f32 %v156, %v957
    %959 = vmatpush.msra.mxu0 %v958
    %v960 = vand.u32 %v154, 4294901760
    %v961 = vsub.f32 %v154, %v960
    %962 = vmatpush.msra.mxu0 %v961
    %v963 = vand.u32 %v152, 4294901760
    %v964 = vsub.f32 %v152, %v963
    %965 = vmatpush.msra.mxu0 %v964
    %v966 = vand.u32 %v150, 4294901760
    %v967 = vsub.f32 %v150, %v966
    %968 = vmatpush.msra.mxu0 %v967
    %v969 = vand.u32 %v148, 4294901760
    %v970 = vsub.f32 %v148, %v969
    %971 = vmatpush.msra.mxu0 %v970
    %v972 = vand.u32 %v146, 4294901760
    %v973 = vsub.f32 %v146, %v972
    %974 = vmatpush.msra.mxu0 %v973
    %v975 = vand.u32 %v144, 4294901760
    %v976 = vsub.f32 %v144, %v975
    %977 = vmatpush.msra.mxu0 %v976
    %v978 = vand.u32 %v142, 4294901760
    %v979 = vsub.f32 %v142, %v978
    %980 = vmatpush.msra.mxu0 %v979
    %v981 = vand.u32 %v140, 4294901760
    %v982 = vsub.f32 %v140, %v981
    %983 = vmatpush.msra.mxu0 %v982
    %v984 = vand.u32 %v138, 4294901760
    %v985 = vsub.f32 %v138, %v984
    %986 = vmatpush.msra.mxu0 %v985
    %v987 = vand.u32 %v136, 4294901760
    %v988 = vsub.f32 %v136, %v987
    %989 = vmatpush.msra.mxu0 %v988
    %v990 = vand.u32 %v134, 4294901760
    %v991 = vsub.f32 %v134, %v990
    %992 = vmatpush.msra.mxu0 %v991
    %v993 = vand.u32 %v132, 4294901760
    %v994 = vsub.f32 %v132, %v993
    %995 = vmatpush.msra.mxu0 %v994
    %v996 = vand.u32 %v130, 4294901760
    %v997 = vsub.f32 %v130, %v996
    %998 = vmatpush.msra.mxu0 %v997
    %v999 = vand.u32 %v128, 4294901760
    %v1000 = vsub.f32 %v128, %v999
    %1001 = vmatmul.f32.gmra.mxu0 %v1000
    %v1002 = vpop.f32.mrf.mxu0
    %v1003 = vadd.f32 %v949, %v1002
    %1004 = vdwg.mxu0
    %v1005 = vand.u32 %v160, 4294901760
    %1006 = vmatpush.msra.mxu0 %v1005
    %v1007 = vand.u32 %v158, 4294901760
    %1008 = vmatpush.msra.mxu0 %v1007
    %v1009 = vand.u32 %v156, 4294901760
    %1010 = vmatpush.msra.mxu0 %v1009
    %v1011 = vand.u32 %v154, 4294901760
    %1012 = vmatpush.msra.mxu0 %v1011
    %v1013 = vand.u32 %v152, 4294901760
    %1014 = vmatpush.msra.mxu0 %v1013
    %v1015 = vand.u32 %v150, 4294901760
    %1016 = vmatpush.msra.mxu0 %v1015
    %v1017 = vand.u32 %v148, 4294901760
    %1018 = vmatpush.msra.mxu0 %v1017
    %v1019 = vand.u32 %v146, 4294901760
    %1020 = vmatpush.msra.mxu0 %v1019
    %v1021 = vand.u32 %v144, 4294901760
    %1022 = vmatpush.msra.mxu0 %v1021
    %v1023 = vand.u32 %v142, 4294901760
    %1024 = vmatpush.msra.mxu0 %v1023
    %v1025 = vand.u32 %v140, 4294901760
    %1026 = vmatpush.msra.mxu0 %v1025
    %v1027 = vand.u32 %v138, 4294901760
    %1028 = vmatpush.msra.mxu0 %v1027
    %v1029 = vand.u32 %v136, 4294901760
    %1030 = vmatpush.msra.mxu0 %v1029
    %v1031 = vand.u32 %v134, 4294901760
    %1032 = vmatpush.msra.mxu0 %v1031
    %v1033 = vand.u32 %v132, 4294901760
    %1034 = vmatpush.msra.mxu0 %v1033
    %v1035 = vand.u32 %v130, 4294901760
    %1036 = vmatpush.msra.mxu0 %v1035
    %v1037 = vand.u32 %v128, 4294901760
    %v1038 = vsub.f32 %v128, %v1037
    %v1039 = vand.u32 %v1038, 4294901760
    %1040 = vmatmul.f32.gmra.mxu0 %v1039
    %v1041 = vpop.f32.mrf.mxu0
    %v1042 = vadd.f32 %v1003, %v1041
    %1043 = vdwg.mxu0
    %v1044 = vand.u32 %v160, 4294901760
    %v1045 = vsub.f32 %v160, %v1044
    %v1046 = vand.u32 %v1045, 4294901760
    %1047 = vmatpush.msra.mxu0 %v1046
    %v1048 = vand.u32 %v158, 4294901760
    %v1049 = vsub.f32 %v158, %v1048
    %v1050 = vand.u32 %v1049, 4294901760
    %1051 = vmatpush.msra.mxu0 %v1050
    %v1052 = vand.u32 %v156, 4294901760
    %v1053 = vsub.f32 %v156, %v1052
    %v1054 = vand.u32 %v1053, 4294901760
    %1055 = vmatpush.msra.mxu0 %v1054
    %v1056 = vand.u32 %v154, 4294901760
    %v1057 = vsub.f32 %v154, %v1056
    %v1058 = vand.u32 %v1057, 4294901760
    %1059 = vmatpush.msra.mxu0 %v1058
    %v1060 = vand.u32 %v152, 4294901760
    %v1061 = vsub.f32 %v152, %v1060
    %v1062 = vand.u32 %v1061, 4294901760
    %1063 = vmatpush.msra.mxu0 %v1062
    %v1064 = vand.u32 %v150, 4294901760
    %v1065 = vsub.f32 %v150, %v1064
    %v1066 = vand.u32 %v1065, 4294901760
    %1067 = vmatpush.msra.mxu0 %v1066
    %v1068 = vand.u32 %v148, 4294901760
    %v1069 = vsub.f32 %v148, %v1068
    %v1070 = vand.u32 %v1069, 4294901760
    %1071 = vmatpush.msra.mxu0 %v1070
    %v1072 = vand.u32 %v146, 4294901760
    %v1073 = vsub.f32 %v146, %v1072
    %v1074 = vand.u32 %v1073, 4294901760
    %1075 = vmatpush.msra.mxu0 %v1074
    %v1076 = vand.u32 %v144, 4294901760
    %v1077 = vsub.f32 %v144, %v1076
    %v1078 = vand.u32 %v1077, 4294901760
    %1079 = vmatpush.msra.mxu0 %v1078
    %v1080 = vand.u32 %v142, 4294901760
    %v1081 = vsub.f32 %v142, %v1080
    %v1082 = vand.u32 %v1081, 4294901760
    %1083 = vmatpush.msra.mxu0 %v1082
    %v1084 = vand.u32 %v140, 4294901760
    %v1085 = vsub.f32 %v140, %v1084
    %v1086 = vand.u32 %v1085, 4294901760
    %1087 = vmatpush.msra.mxu0 %v1086
    %v1088 = vand.u32 %v138, 4294901760
    %v1089 = vsub.f32 %v138, %v1088
    %v1090 = vand.u32 %v1089, 4294901760
    %1091 = vmatpush.msra.mxu0 %v1090
    %v1092 = vand.u32 %v136, 4294901760
    %v1093 = vsub.f32 %v136, %v1092
    %v1094 = vand.u32 %v1093, 4294901760
    %1095 = vmatpush.msra.mxu0 %v1094
    %v1096 = vand.u32 %v134, 4294901760
    %v1097 = vsub.f32 %v134, %v1096
    %v1098 = vand.u32 %v1097, 4294901760
    %1099 = vmatpush.msra.mxu0 %v1098
    %v1100 = vand.u32 %v132, 4294901760
    %v1101 = vsub.f32 %v132, %v1100
    %v1102 = vand.u32 %v1101, 4294901760
    %1103 = vmatpush.msra.mxu0 %v1102
    %v1104 = vand.u32 %v130, 4294901760
    %v1105 = vsub.f32 %v130, %v1104
    %v1106 = vand.u32 %v1105, 4294901760
    %1107 = vmatpush.msra.mxu0 %v1106
    %v1108 = vand.u32 %v128, 4294901760
    %1109 = vmatmul.f32.gmra.mxu0 %v1108
    %v1110 = vpop.f32.mrf.mxu0
    %v1111 = vadd.f32 %v1042, %v1110
    %1112 = vdwg.mxu0
    %v1113 = vand.u32 %v160, 4294901760
    %1114 = vmatpush.msra.mxu0 %v1113
    %v1115 = vand.u32 %v158, 4294901760
    %1116 = vmatpush.msra.mxu0 %v1115
    %v1117 = vand.u32 %v156, 4294901760
    %1118 = vmatpush.msra.mxu0 %v1117
    %v1119 = vand.u32 %v154, 4294901760
    %1120 = vmatpush.msra.mxu0 %v1119
    %v1121 = vand.u32 %v152, 4294901760
    %1122 = vmatpush.msra.mxu0 %v1121
    %v1123 = vand.u32 %v150, 4294901760
    %1124 = vmatpush.msra.mxu0 %v1123
    %v1125 = vand.u32 %v148, 4294901760
    %1126 = vmatpush.msra.mxu0 %v1125
    %v1127 = vand.u32 %v146, 4294901760
    %1128 = vmatpush.msra.mxu0 %v1127
    %v1129 = vand.u32 %v144, 4294901760
    %1130 = vmatpush.msra.mxu0 %v1129
    %v1131 = vand.u32 %v142, 4294901760
    %1132 = vmatpush.msra.mxu0 %v1131
    %v1133 = vand.u32 %v140, 4294901760
    %1134 = vmatpush.msra.mxu0 %v1133
    %v1135 = vand.u32 %v138, 4294901760
    %1136 = vmatpush.msra.mxu0 %v1135
    %v1137 = vand.u32 %v136, 4294901760
    %1138 = vmatpush.msra.mxu0 %v1137
    %v1139 = vand.u32 %v134, 4294901760
    %1140 = vmatpush.msra.mxu0 %v1139
    %v1141 = vand.u32 %v132, 4294901760
    %1142 = vmatpush.msra.mxu0 %v1141
    %v1143 = vand.u32 %v130, 4294901760
    %1144 = vmatpush.msra.mxu0 %v1143
    %v1145 = vand.u32 %v128, 4294901760
    %1146 = vmatmul.f32.gmra.mxu0 %v1145
    %v1147 = vpop.f32.mrf.mxu0
    %v1148 = vadd.f32 %v1111, %v1147
    %1149 = vdwg.mxu0
    %v1150 = vld [vmem:[%s4] sm:$0x3]
    %v1152 = vperm.slane %v1150, 0
    %v1153 = vperm.slane %v1150, 1
    %v1156 = vadd.f32 %v807, %v1152
    %v1157 = vadd.f32 %v1148, %v1153
    %v1160 = vrot.slane %v1157, 6
    %vm1161 = vcmask 1041408
    %v1162 = vsel %vm1161, %v1156, %v1160
    %1164 = vst [vmem:[#allocation10] sm:$0xf] %v1162
    // Predicated region
    $region38: #{tpu_custom_call.1} parent=1 // pred_check
      _
    $region39: #{tpu_custom_call.1} parent=1 // pred_check_branch
      %1166 = sbr.rel (0) target = $region41
    $region40: #{tpu_custom_call.1} parent=1 // pred_region
      %1168 = vsyncadd [#allocation4], 0
      %s1170 = sshll.u32 [#allocation10], 4
      %s1171 = int_to_ptr.vmem [resolvable:$true] %s1170
      %s1172 = sshll.u32 %s5, 4
      %s1173 = int_to_ptr.hbm [resolvable:$true] %s1172
      %1175 = dma.vmem_to_hbm [thread:$0]  %s1171, 64, %s1173, [#allocation4]
    $region41: #{tpu_custom_call.1} parent=1 // pred_fallthru
      _
    // Predicated region
    $region42: #{tpu_custom_call.1} parent=1 // pred_check
      _
    $region43: #{tpu_custom_call.1} parent=1 // pred_check_branch
      %1177 = sbr.rel (0) target = $region45
    $region44: #{tpu_custom_call.1} parent=1 // pred_region
      %1179 = dma.done [#allocation4], 64
    $region45: #{tpu_custom_call.1} parent=1 // pred_fallthru
      _
    %1180 = vsyncpa [#allocation3], 1
    %1181 = vsyncpa [#allocation6], 1
    %1182 = vsyncpa [#allocation9], 1
    %1183 = vsyncpa [#allocation4], 1

</llo_original>
